<compile_context>
chip_gen: v7x
topology: tpu7x:2x2x1
jax: 0.10.0
libtpu: 0.0.40
codegen_flags: <defaults>
</compile_context>

<pallas_src>
import jax
import jax.numpy as jnp
from jax import lax
from jax.experimental import pallas as pl
from jax.experimental.pallas import tpu as pltpu


def _make_critic_kernel(dot_dtype):
    """Fused 3-layer MLP. Layers 1-2 batch-major, layer 3 emits lane-dense row.

    x_ref:   [TB, In]    activations for this batch tile (native layout)
    w1_ref:  [In, H]     transposed l1 weight
    w2_ref:  [H,  H]     transposed l2 weight
    w3_ref:  [Out, H]    PyTorch-native l3 weight (used as LHS, trans-B dot)
    b1/b2:   [1, H]      bias rows (broadcast over the sublane/batch axis)
    b3:      [Out, 1]    bias column (broadcast over the lane/batch axis)
    o_ref:   [Out, TB]   lane-dense output tile (unmasked store)
    """

    def kernel(x_ref, w1_ref, b1_ref, w2_ref, b2_ref, w3_ref, b3_ref, o_ref):
        cast = lambda a: a.astype(dot_dtype)

        x = x_ref[...]                                              # f32 [TB, In]

        h1 = jnp.dot(cast(x), cast(w1_ref[...]),
                     preferred_element_type=jnp.float32) + b1_ref[...]
        h1 = jnp.maximum(h1, 0.0)                                   # f32 [TB, H]

        h2 = jnp.dot(cast(h1), cast(w2_ref[...]),
                     preferred_element_type=jnp.float32) + b2_ref[...]
        h2 = jnp.maximum(h2, 0.0)                                   # f32 [TB, H]

        # Layer 3 as w3 (contract last dim) x h2 (contract last dim):
        # result is [Out, TB] = lane-dense over the batch, no transpose needed.
        o = lax.dot_general(cast(w3_ref[...]), cast(h2),
                            (((1,), (1,)), ((), ())),
                            preferred_element_type=jnp.float32) + b3_ref[...]
        o_ref[...] = o.astype(o_ref.dtype)

    return kernel


def critic_forward(x, params, *, tile_b=2048, dot_dtype=jnp.float32):
    """Run the fused critic MLP as a single batch-tiled Pallas kernel.

    x:      [B, Input_size] float32 (standard batch-major, like PyTorch)
    params: dict with PyTorch-layout tensors:
              w1 [H, In],  b1 [H]
              w2 [H, H],   b2 [H]
              w3 [Out, H], b3 [Out]
    dot_dtype: dtype for the MXU dot operands (jnp.float32 for exact PyTorch
               semantics, jnp.bfloat16 for ~3x less MXU work).
    returns: [B, Out] float32
    """
    x = jnp.asarray(x, jnp.float32)
    B, in_size = x.shape
    hidden = params["w1"].shape[0]
    out_size = params["w3"].shape[0]

    # Tile choice: big tiles (multiple of 512) amortize per-step overhead.
    # If the whole batch fits in one tile, take the batch as a single block
    # (block == full array dim is always a legal block shape).
    if B <= tile_b:
        tile_b_eff, n_tiles = B, 1
    else:
        tile_b_eff, n_tiles = tile_b, pl.cdiv(B, tile_b)
    b_pad = n_tiles * tile_b_eff   # output padded so its stores are in-bounds

    # Tiny wrapper-side weight transposes/reshapes (<=16 KB total).
    w1t = params["w1"].T                       # [In, H]
    w2t = params["w2"].T                       # [H, H]
    w3 = params["w3"]                          # [Out, H]
    b1 = params["b1"].reshape(1, hidden)       # broadcast over sublanes (batch)
    b2 = params["b2"].reshape(1, hidden)
    b3 = params["b3"].reshape(out_size, 1)     # broadcast over lanes (batch)

    kernel = _make_critic_kernel(dot_dtype)

    out_t = pl.pallas_call(
        kernel,
        out_shape=jax.ShapeDtypeStruct((out_size, b_pad), jnp.float32),
        grid_spec=pltpu.PrefetchScalarGridSpec(
            num_scalar_prefetch=0,
            grid=(n_tiles,),
            in_specs=[
                # activations in native [B, In] layout, tiled over batch rows
                pl.BlockSpec((tile_b_eff, in_size), lambda i: (i, 0)),
                # weights / biases: full arrays, constant index -> VMEM-resident
                pl.BlockSpec((in_size, hidden), lambda i: (0, 0)),
                pl.BlockSpec((1, hidden), lambda i: (0, 0)),
                pl.BlockSpec((hidden, hidden), lambda i: (0, 0)),
                pl.BlockSpec((1, hidden), lambda i: (0, 0)),
                pl.BlockSpec((out_size, hidden), lambda i: (0, 0)),
                pl.BlockSpec((out_size, 1), lambda i: (0, 0)),
            ],
            # lane-dense output tile: unmasked vst, contiguous DMA
            out_specs=pl.BlockSpec((out_size, tile_b_eff), lambda i: (0, i)),
        ),
        compiler_params=pltpu.CompilerParams(
            dimension_semantics=("parallel",),      # shard batch tiles (v7x: 2 TCs)
            vmem_limit_bytes=32 * 1024 * 1024),
    )(x, w1t, b1, w2t, b2, w3, b3)

    # Drop output padding (tiny: out_size * b_pad floats) and go back to [B, Out].
    return out_t[:, :B].T


def init_critic_params(key, input_size=4, hidden_size=64, output_size=1):
    """PyTorch-nn.Linear-style init: U(-1/sqrt(fan_in), 1/sqrt(fan_in))."""
    def linear_init(k, fan_in, fan_out):
        kw, kb = jax.random.split(k)
        bound = 1.0 / jnp.sqrt(jnp.float32(fan_in))
        w = jax.random.uniform(kw, (fan_out, fan_in), jnp.float32, -bound, bound)
        b = jax.random.uniform(kb, (fan_out,), jnp.float32, -bound, bound)
        return w, b

    k1, k2, k3 = jax.random.split(key, 3)
    w1, b1 = linear_init(k1, input_size, hidden_size)
    w2, b2 = linear_init(k2, hidden_size, hidden_size)
    w3, b3 = linear_init(k3, hidden_size, output_size)
    return {"w1": w1, "b1": b1, "w2": w2, "b2": b2, "w3": w3, "b3": b3}


def critic_forward_ref(x, p):
    """Pure-JAX f32 reference (matches PyTorch Critic_NN.forward)."""
    h1 = jnp.maximum(x @ p["w1"].T + p["b1"], 0.0)
    h2 = jnp.maximum(h1 @ p["w2"].T + p["b2"], 0.0)
    return h2 @ p["w3"].T + p["b3"]


def critic_forward_ref_bf16(x, p):
    """Reference matching the bf16-dot-operand kernel configuration."""
    c = lambda a: a.astype(jnp.bfloat16)
    h1 = jnp.maximum(jnp.dot(c(x), c(p["w1"]).T,
                             preferred_element_type=jnp.float32) + p["b1"], 0.0)
    h2 = jnp.maximum(jnp.dot(c(h1), c(p["w2"]).T,
                             preferred_element_type=jnp.float32) + p["b2"], 0.0)
    return jnp.dot(c(h2), c(p["w3"]).T,
                   preferred_element_type=jnp.float32) + p["b3"]


if __name__ == "__main__":
    key = jax.random.PRNGKey(0)
    k_params, k_x1, k_x2 = jax.random.split(key, 3)

    input_size, hidden_size, output_size = 4, 64, 1
    params = init_critic_params(k_params, input_size, hidden_size, output_size)

    # Small batch -> single full-batch block (B <= tile_b path).
    x_small = jax.random.normal(k_x1, (8, input_size), dtype=jnp.float32)
    out_small = jax.block_until_ready(critic_forward(x_small, params))
    ref_small = critic_forward_ref(x_small, params)
    assert out_small.shape == (8, output_size), out_small.shape
    assert jnp.allclose(out_small, ref_small, atol=1e-5, rtol=1e-5)

    # Multi-tile grid with a ragged tail (300 = 2*128 + 44) at a deliberately
    # small tile so the boundary-block path is exercised at small shapes.
    # (Production default tile_b=2048.)
    x_big = jax.random.normal(k_x2, (300, input_size), dtype=jnp.float32)
    out_big = jax.block_until_ready(critic_forward(x_big, params, tile_b=128))
    ref_big = critic_forward_ref(x_big, params)
    assert out_big.shape == (300, output_size), out_big.shape
    assert jnp.allclose(out_big, ref_big, atol=1e-5, rtol=1e-5)

    # bf16 dot-operand variant (3x less MXU work); compared against a
    # matching bf16 reference (bf16 operand rounding, f32 accumulation).
    out_bf16 = jax.block_until_ready(
        critic_forward(x_big, params, tile_b=128, dot_dtype=jnp.bfloat16))
    ref_bf16 = critic_forward_ref_bf16(x_big, params)
    assert out_bf16.shape == (300, output_size), out_bf16.shape
    assert jnp.allclose(out_bf16, ref_bf16, atol=1e-2, rtol=1e-2)

    # TODO(synk): training-side methods (Adam update, freeze_params,
    # copy_weights, soft_update) are optimizer utilities, not part of the
    # forward pass, and are not implemented as kernels.
    print("KERNEL_OK")
</pallas_src>

<mosaic_0001>
module attributes {stable_mosaic.version = 11 : i64} {
  func.func @kernel(%arg0: i32, %arg1: memref<8x4xf32, #tpu.memory_space<vmem>>, %arg2: memref<4x64xf32, #tpu.memory_space<vmem>>, %arg3: memref<1x64xf32, #tpu.memory_space<vmem>>, %arg4: memref<64x64xf32, #tpu.memory_space<vmem>>, %arg5: memref<1x64xf32, #tpu.memory_space<vmem>>, %arg6: memref<1x64xf32, #tpu.memory_space<vmem>>, %arg7: memref<1x1xf32, #tpu.memory_space<vmem>>, %arg8: memref<1x8xf32, #tpu.memory_space<vmem>>) attributes {dimension_semantics = [#tpu.dimension_semantics<parallel>], iteration_bounds = array<i64: 1>, scalar_prefetch = 0 : i64, scratch_operands = 0 : i64, tpu.core_type = #tpu.core_type<tc>, window_params = [{transform_indices = @transform_0, window_bounds = array<i64: 8, 4>}, {pipeline_mode = #tpu.pipeline_mode<synchronous>, transform_indices = @transform_1, window_bounds = array<i64: 4, 64>}, {pipeline_mode = #tpu.pipeline_mode<synchronous>, transform_indices = @transform_2, window_bounds = array<i64: 1, 64>}, {pipeline_mode = #tpu.pipeline_mode<synchronous>, transform_indices = @transform_3, window_bounds = array<i64: 64, 64>}, {pipeline_mode = #tpu.pipeline_mode<synchronous>, transform_indices = @transform_4, window_bounds = array<i64: 1, 64>}, {pipeline_mode = #tpu.pipeline_mode<synchronous>, transform_indices = @transform_5, window_bounds = array<i64: 1, 64>}, {pipeline_mode = #tpu.pipeline_mode<synchronous>, transform_indices = @transform_6, window_bounds = array<i64: 1, 1>}, {transform_indices = @transform_7, window_bounds = array<i64: 1, 8>}]} {
    %c0 = arith.constant 0 : index
    %c0_0 = arith.constant 0 : index
    %0 = vector.load %arg1[%c0, %c0_0] : memref<8x4xf32, #tpu.memory_space<vmem>>, vector<8x4xf32>
    %c0_1 = arith.constant 0 : index
    %c0_2 = arith.constant 0 : index
    %1 = vector.load %arg2[%c0_1, %c0_2] : memref<4x64xf32, #tpu.memory_space<vmem>>, vector<4x64xf32>
    %cst = arith.constant dense<0.000000e+00> : vector<8x64xf32>
    %2 = tpu.matmul %0, %1, %cst {dimension_numbers = #tpu.dot_dimension_numbers<[1], [0], [0], [1], [0, 0, 1, 1], [], []>} : vector<8x4xf32>, vector<4x64xf32>, vector<8x64xf32> -> vector<8x64xf32>
    %c0_3 = arith.constant 0 : index
    %c0_4 = arith.constant 0 : index
    %3 = vector.load %arg3[%c0_3, %c0_4] : memref<1x64xf32, #tpu.memory_space<vmem>>, vector<1x64xf32>
    %4 = vector.broadcast %3 : vector<1x64xf32> to vector<8x64xf32>
    %5 = arith.addf %2, %4 : vector<8x64xf32>
    %cst_5 = arith.constant 0.000000e+00 : f32
    %6 = vector.broadcast %cst_5 : f32 to vector<8x64xf32>
    %7 = arith.maximumf %5, %6 : vector<8x64xf32>
    %c0_6 = arith.constant 0 : index
    %c0_7 = arith.constant 0 : index
    %8 = vector.load %arg4[%c0_6, %c0_7] : memref<64x64xf32, #tpu.memory_space<vmem>>, vector<64x64xf32>
    %cst_8 = arith.constant dense<0.000000e+00> : vector<8x64xf32>
    %9 = tpu.matmul %7, %8, %cst_8 {dimension_numbers = #tpu.dot_dimension_numbers<[1], [0], [0], [1], [0, 0, 1, 1], [], []>} : vector<8x64xf32>, vector<64x64xf32>, vector<8x64xf32> -> vector<8x64xf32>
    %c0_9 = arith.constant 0 : index
    %c0_10 = arith.constant 0 : index
    %10 = vector.load %arg5[%c0_9, %c0_10] : memref<1x64xf32, #tpu.memory_space<vmem>>, vector<1x64xf32>
    %11 = vector.broadcast %10 : vector<1x64xf32> to vector<8x64xf32>
    %12 = arith.addf %9, %11 : vector<8x64xf32>
    %cst_11 = arith.constant 0.000000e+00 : f32
    %13 = vector.broadcast %cst_11 : f32 to vector<8x64xf32>
    %14 = arith.maximumf %12, %13 : vector<8x64xf32>
    %c0_12 = arith.constant 0 : index
    %c0_13 = arith.constant 0 : index
    %15 = vector.load %arg6[%c0_12, %c0_13] : memref<1x64xf32, #tpu.memory_space<vmem>>, vector<1x64xf32>
    %cst_14 = arith.constant dense<0.000000e+00> : vector<1x8xf32>
    %16 = tpu.matmul %15, %14, %cst_14 {dimension_numbers = #tpu.dot_dimension_numbers<[1], [1], [0], [0], [0, 0, 1, 0], [], []>} : vector<1x64xf32>, vector<8x64xf32>, vector<1x8xf32> -> vector<1x8xf32>
    %c0_15 = arith.constant 0 : index
    %c0_16 = arith.constant 0 : index
    %17 = vector.load %arg7[%c0_15, %c0_16] : memref<1x1xf32, #tpu.memory_space<vmem>>, vector<1x1xf32>
    %18 = vector.broadcast %17 : vector<1x1xf32> to vector<1x8xf32>
    %19 = arith.addf %16, %18 : vector<1x8xf32>
    %c0_17 = arith.constant 0 : index
    %c0_18 = arith.constant 0 : index
    %20 = vector.load %arg8[%c0_17, %c0_18] : memref<1x8xf32, #tpu.memory_space<vmem>>, vector<1x8xf32>
    tpu.vector_store %arg8[%c0_17, %c0_18], %19 {strides = array<i32>} : memref<1x8xf32, #tpu.memory_space<vmem>>, vector<1x8xf32>,
    return
  }
  func.func @transform_0(%arg0: i32) -> (i32, i32) {
    %c0_i32 = arith.constant 0 : i32
    %c0_i32_0 = arith.constant 0 : i32
    return %arg0, %c0_i32 : i32, i32
  }
  func.func @transform_1(%arg0: i32) -> (i32, i32) {
    %c0_i32 = arith.constant 0 : i32
    %c0_i32_0 = arith.constant 0 : i32
    %c0_i32_1 = arith.constant 0 : i32
    return %c0_i32, %c0_i32_0 : i32, i32
  }
  func.func @transform_2(%arg0: i32) -> (i32, i32) {
    %c0_i32 = arith.constant 0 : i32
    %c0_i32_0 = arith.constant 0 : i32
    %c0_i32_1 = arith.constant 0 : i32
    return %c0_i32, %c0_i32_0 : i32, i32
  }
  func.func @transform_3(%arg0: i32) -> (i32, i32) {
    %c0_i32 = arith.constant 0 : i32
    %c0_i32_0 = arith.constant 0 : i32
    %c0_i32_1 = arith.constant 0 : i32
    return %c0_i32, %c0_i32_0 : i32, i32
  }
  func.func @transform_4(%arg0: i32) -> (i32, i32) {
    %c0_i32 = arith.constant 0 : i32
    %c0_i32_0 = arith.constant 0 : i32
    %c0_i32_1 = arith.constant 0 : i32
    return %c0_i32, %c0_i32_0 : i32, i32
  }
  func.func @transform_5(%arg0: i32) -> (i32, i32) {
    %c0_i32 = arith.constant 0 : i32
    %c0_i32_0 = arith.constant 0 : i32
    %c0_i32_1 = arith.constant 0 : i32
    return %c0_i32, %c0_i32_0 : i32, i32
  }
  func.func @transform_6(%arg0: i32) -> (i32, i32) {
    %c0_i32 = arith.constant 0 : i32
    %c0_i32_0 = arith.constant 0 : i32
    %c0_i32_1 = arith.constant 0 : i32
    return %c0_i32, %c0_i32_0 : i32, i32
  }
  func.func @transform_7(%arg0: i32) -> (i32, i32) {
    %c0_i32 = arith.constant 0 : i32
    %c0_i32_0 = arith.constant 0 : i32
    return %c0_i32, %arg0 : i32, i32
  }
}

</mosaic_0001>

<llo_original>
// kernel: tpu_custom_call.1
$region0: #{tpu_custom_call.1}
  #allocation0 [shape = 'u32[]', space=smem, size = 0x4, offset = 0x4, fixed_abs, tag = 'smem constant byte address 0x4 - core index']
  #allocation1 [shape = 'u32[144,128]{1,0:T(1,128)}', space=vmem, size = 0x12000, scoped, tag = 'internal scratch']
  #allocation2 [shape = 'f32[1,1]{1,0:T(1,128)S(1)}', space=vmem, size = 0x200, scoped, tag = 'scoped memory for tpu_custom_call.1']
  %s0 = inlined_call_operand.vmem [shape: f32[8,4], index: 0, kind: input, shape index: {}]
  %s1 = inlined_call_operand.vmem [shape: f32[4,64], index: 1, kind: input, shape index: {}]
  %s2 = inlined_call_operand.vmem [shape: f32[1,64], index: 2, kind: input, shape index: {}]
  %s3 = inlined_call_operand.hbm [shape: f32[64,64], index: 3, kind: input, shape index: {}]
  %s4 = inlined_call_operand.vmem [shape: f32[1,64], index: 4, kind: input, shape index: {}]
  %s5 = inlined_call_operand.vmem [shape: f32[1,64], index: 5, kind: input, shape index: {}]
  %s6 = inlined_call_operand.<no memory space> [shape: f32[1,1], index: 6, kind: input, shape index: {}]
  %s7 = inlined_call_operand.hbm [shape: f32[1,8], index: 7, kind: output, shape index: {}]
  %s8 = sld [smem:[#allocation0]]
  $region42: #{tpu_custom_call.1} parent=0
    _
  %s10 = ssub.s32 1, %s8
  %s11 = scalar_select 0, %s10, %s8
  %v12 = vstv %s6
  %13 = vst [vmem:[#allocation2] sm:$0x1] %v12
  $region1: #{tpu_custom_call.1} parent=0
    #allocation3 [shape = 'u8[32768]{0}', space=vmem, size = 0x8000, scoped, tag = 'input window, operand 3, single buffered']
    #allocation4 [shape = 's32[1]{0}', space=sflag, size = 0x4, scoped, tag = 'scoped memory for tpu_custom_call.1']
    #allocation5 [shape = 's32[1]{0}', space=sflag, size = 0x4, scoped, tag = 'scoped memory for tpu_custom_call.1']
    #allocation6 [shape = 'u8[512]{0}', space=vmem, size = 0x400, scoped, tag = 'output window, operand 0, single buffered']
    %14 = vsyncpa [#allocation4], 0
    %15 = vsyncpa [#allocation5], 0
    // Predicated region
    $region2: #{tpu_custom_call.1} parent=1 // pred_check
      _
    $region3: #{tpu_custom_call.1} parent=1 // pred_check_branch
      %17 = sbr.rel (0) target = $region5
    $region4: #{tpu_custom_call.1} parent=1 // pred_region
      _
    $region5: #{tpu_custom_call.1} parent=1 // pred_fallthru
      _
    // Predicated region
    $region6: #{tpu_custom_call.1} parent=1 // pred_check
      _
    $region7: #{tpu_custom_call.1} parent=1 // pred_check_branch
      %19 = sbr.rel (0) target = $region9
    $region8: #{tpu_custom_call.1} parent=1 // pred_region
      _
    $region9: #{tpu_custom_call.1} parent=1 // pred_fallthru
      _
    // Predicated region
    $region10: #{tpu_custom_call.1} parent=1 // pred_check
      _
    $region11: #{tpu_custom_call.1} parent=1 // pred_check_branch
      %21 = sbr.rel (0) target = $region13
    $region12: #{tpu_custom_call.1} parent=1 // pred_region
      _
    $region13: #{tpu_custom_call.1} parent=1 // pred_fallthru
      _
    // Predicated region
    $region14: #{tpu_custom_call.1} parent=1 // pred_check
      _
    $region15: #{tpu_custom_call.1} parent=1 // pred_check_branch
      %23 = sbr.rel (0) target = $region17
    $region16: #{tpu_custom_call.1} parent=1 // pred_region
      %s25 = ssub.s32 1024, 1024
      %26 = vsyncadd [#allocation4], %s25
      %s27 = sshll.u32 [#allocation3], 4
      %s28 = int_to_ptr.vmem [resolvable:$true] %s27
      %33 = dma.hbm_to_vmem [thread:$0]  %s3, 1024, %s28, [#allocation4], 128, 128, 8
    $region17: #{tpu_custom_call.1} parent=1 // pred_fallthru
      _
    // Predicated region
    $region18: #{tpu_custom_call.1} parent=1 // pred_check
      _
    $region19: #{tpu_custom_call.1} parent=1 // pred_check_branch
      %35 = sbr.rel (0) target = $region21
    $region20: #{tpu_custom_call.1} parent=1 // pred_region
      _
    $region21: #{tpu_custom_call.1} parent=1 // pred_fallthru
      _
    // Predicated region
    $region22: #{tpu_custom_call.1} parent=1 // pred_check
      _
    $region23: #{tpu_custom_call.1} parent=1 // pred_check_branch
      %37 = sbr.rel (0) target = $region25
    $region24: #{tpu_custom_call.1} parent=1 // pred_region
      _
    $region25: #{tpu_custom_call.1} parent=1 // pred_fallthru
      _
    // Predicated region
    $region26: #{tpu_custom_call.1} parent=1 // pred_check
      _
    $region27: #{tpu_custom_call.1} parent=1 // pred_check_branch
      %39 = sbr.rel (0) target = $region29
    $region28: #{tpu_custom_call.1} parent=1 // pred_region
      _
    $region29: #{tpu_custom_call.1} parent=1 // pred_fallthru
      _
    // Predicated region
    $region30: #{tpu_custom_call.1} parent=1 // pred_check
      _
    $region31: #{tpu_custom_call.1} parent=1 // pred_check_branch
      %41 = sbr.rel (0) target = $region33
    $region32: #{tpu_custom_call.1} parent=1 // pred_region
      %42 = dma.done [#allocation4], 1024
    $region33: #{tpu_custom_call.1} parent=1 // pred_fallthru
      _
    %v43 = vld [vmem:[%s0] sm:$0xff]
    %v44 = vld [vmem:[%s1] sm:$0xf]
    %v45 = vld [vmem:[%s2] sm:$0x1]
    %v47 = vlaneseq
    %v48 = vshrl.u32 %v47, 7
    %v49 = vsub.s32 0, %v48
    %v50 = vrot.slane %v45, %v49
    %vm52 = vcmask 31744
    %v54 = vsel %vm52, %v43, 0
    %vm56 = vcmask 1043456
    %v58 = vsel %vm56, %v44, 0
    %60 = vmatprep.subr.mxu0 0.0
    %61 = vmatpush1.msra.mxu0 %v58
    %62 = vmatprep.subr.mxu0 0.0
    %63 = vmatpush1.msra.mxu0 0.0
    %64 = vmatprep.subr.mxu0 0.0
    %65 = vmatpush1.msra.mxu0 0.0
    %66 = vmatprep.subr.mxu0 0.0
    %67 = vmatpush1.msra.mxu0 0.0
    %68 = vmatprep.subr.mxu0 0.0
    %69 = vmatpush1.msra.mxu0 0.0
    %70 = vmatprep.subr.mxu0 0.0
    %71 = vmatpush1.msra.mxu0 0.0
    %72 = vmatprep.subr.mxu0 0.0
    %73 = vmatpush1.msra.mxu0 0.0
    %74 = vmatprep.subr.mxu0 0.0
    %75 = vmatpush1.msra.mxu0 0.0
    %76 = vmatprep.subr.mxu0 0.0
    %77 = vmatpush1.msra.mxu0 0.0
    %78 = vmatprep.subr.mxu0 0.0
    %79 = vmatpush1.msra.mxu0 0.0
    %80 = vmatprep.subr.mxu0 0.0
    %81 = vmatpush1.msra.mxu0 0.0
    %82 = vmatprep.subr.mxu0 0.0
    %83 = vmatpush1.msra.mxu0 0.0
    %84 = vmatprep.subr.mxu0 0.0
    %85 = vmatpush1.msra.mxu0 0.0
    %86 = vmatprep.subr.mxu0 0.0
    %87 = vmatpush1.msra.mxu0 0.0
    %88 = vmatprep.subr.mxu0 0.0
    %89 = vmatpush1.msra.mxu0 0.0
    %90 = vmatprep.subr.mxu0 0.0
    %91 = vmatpush1.msra.mxu0 0.0
    %92 = vmatprep.subr.mxu0 0.0
    %93 = vmatpush1.msra.mxu0 0.0
    %94 = vmatprep.subr.mxu0 0.0
    %95 = vmatpush1.msra.mxu0 0.0
    %96 = vmatprep.subr.mxu0 0.0
    %97 = vmatpush1.msra.mxu0 0.0
    %98 = vmatprep.subr.mxu0 0.0
    %99 = vmatpush1.msra.mxu0 0.0
    %100 = vmatprep.subr.mxu0 0.0
    %101 = vmatpush1.msra.mxu0 0.0
    %102 = vmatprep.subr.mxu0 0.0
    %103 = vmatpush1.msra.mxu0 0.0
    %104 = vmatprep.subr.mxu0 0.0
    %105 = vmatpush1.msra.mxu0 0.0
    %106 = vmatprep.subr.mxu0 0.0
    %107 = vmatpush1.msra.mxu0 0.0
    %108 = vmatprep.subr.mxu0 0.0
    %109 = vmatpush1.msra.mxu0 0.0
    %110 = vmatprep.subr.mxu0 0.0
    %111 = vmatpush1.msra.mxu0 0.0
    %112 = vmatprep.subr.mxu0 0.0
    %113 = vmatpush1.msra.mxu0 0.0
    %114 = vmatprep.subr.mxu0 0.0
    %115 = vmatpush1.msra.mxu0 0.0
    %116 = vmatprep.subr.mxu0 0.0
    %117 = vmatpush1.msra.mxu0 0.0
    %118 = vmatprep.subr.mxu0 0.0
    %119 = vmatpush1.msra.mxu0 0.0
    %120 = vmatprep.subr.mxu0 0.0
    %121 = vmatpush1.msra.mxu0 0.0
    %122 = vmatprep.subr.mxu0 0.0
    %123 = vmatpush1.msra.mxu0 0.0
    %124 = vmatprep.mubr.f32.mxu0 0.0
    %125 = vmatmul.mubr.f32.gmra.mrb[0].mxu0 %v54
    %v126 = vpop.f32.mrb[0].mxu0
    %v127 = vadd.f32 %v50, %v126
    %v128 = vpop.f32.mrb[0].mxu0
    %129 = vdwg.mxu0
    %v130 = vmax.f32 %v127, 0.0
    %v131 = vld [vmem:[#allocation3] sm:$0xff]
    %v132 = vld [vmem:[#allocation3 + $0x8] sm:$0xff]
    %v133 = vld [vmem:[#allocation3 + $0x10] sm:$0xff]
    %v134 = vld [vmem:[#allocation3 + $0x18] sm:$0xff]
    %v135 = vld [vmem:[#allocation3 + $0x20] sm:$0xff]
    %v136 = vld [vmem:[#allocation3 + $0x28] sm:$0xff]
    %v137 = vld [vmem:[#allocation3 + $0x30] sm:$0xff]
    %v138 = vld [vmem:[#allocation3 + $0x38] sm:$0xff]
    %v139 = vld [vmem:[%s4] sm:$0x1]
    %v141 = vlaneseq
    %v142 = vshrl.u32 %v141, 7
    %v143 = vsub.s32 0, %v142
    %v144 = vrot.slane %v139, %v143
    %vm146 = vcmask 523264
    %v148 = vsel %vm146, %v130, 0
    %150 = vmatprep.subr.mxu0 0.0
    %151 = vmatpush1.msra.mxu0 %v131
    %152 = vmatprep.subr.mxu0 0.0
    %153 = vmatpush1.msra.mxu0 %v132
    %154 = vmatprep.subr.mxu0 0.0
    %155 = vmatpush1.msra.mxu0 %v133
    %156 = vmatprep.subr.mxu0 0.0
    %157 = vmatpush1.msra.mxu0 %v134
    %158 = vmatprep.subr.mxu0 0.0
    %159 = vmatpush1.msra.mxu0 %v135
    %160 = vmatprep.subr.mxu0 0.0
    %161 = vmatpush1.msra.mxu0 %v136
    %162 = vmatprep.subr.mxu0 0.0
    %163 = vmatpush1.msra.mxu0 %v137
    %164 = vmatprep.subr.mxu0 0.0
    %165 = vmatpush1.msra.mxu0 %v138
    %166 = vmatprep.subr.mxu0 0.0
    %167 = vmatpush1.msra.mxu0 0.0
    %168 = vmatprep.subr.mxu0 0.0
    %169 = vmatpush1.msra.mxu0 0.0
    %170 = vmatprep.subr.mxu0 0.0
    %171 = vmatpush1.msra.mxu0 0.0
    %172 = vmatprep.subr.mxu0 0.0
    %173 = vmatpush1.msra.mxu0 0.0
    %174 = vmatprep.subr.mxu0 0.0
    %175 = vmatpush1.msra.mxu0 0.0
    %176 = vmatprep.subr.mxu0 0.0
    %177 = vmatpush1.msra.mxu0 0.0
    %178 = vmatprep.subr.mxu0 0.0
    %179 = vmatpush1.msra.mxu0 0.0
    %180 = vmatprep.subr.mxu0 0.0
    %181 = vmatpush1.msra.mxu0 0.0
    %182 = vmatprep.subr.mxu0 0.0
    %183 = vmatpush1.msra.mxu0 0.0
    %184 = vmatprep.subr.mxu0 0.0
    %185 = vmatpush1.msra.mxu0 0.0
    %186 = vmatprep.subr.mxu0 0.0
    %187 = vmatpush1.msra.mxu0 0.0
    %188 = vmatprep.subr.mxu0 0.0
    %189 = vmatpush1.msra.mxu0 0.0
    %190 = vmatprep.subr.mxu0 0.0
    %191 = vmatpush1.msra.mxu0 0.0
    %192 = vmatprep.subr.mxu0 0.0
    %193 = vmatpush1.msra.mxu0 0.0
    %194 = vmatprep.subr.mxu0 0.0
    %195 = vmatpush1.msra.mxu0 0.0
    %196 = vmatprep.subr.mxu0 0.0
    %197 = vmatpush1.msra.mxu0 0.0
    %198 = vmatprep.subr.mxu0 0.0
    %199 = vmatpush1.msra.mxu0 0.0
    %200 = vmatprep.subr.mxu0 0.0
    %201 = vmatpush1.msra.mxu0 0.0
    %202 = vmatprep.subr.mxu0 0.0
    %203 = vmatpush1.msra.mxu0 0.0
    %204 = vmatprep.subr.mxu0 0.0
    %205 = vmatpush1.msra.mxu0 0.0
    %206 = vmatprep.subr.mxu0 0.0
    %207 = vmatpush1.msra.mxu0 0.0
    %208 = vmatprep.subr.mxu0 0.0
    %209 = vmatpush1.msra.mxu0 0.0
    %210 = vmatprep.subr.mxu0 0.0
    %211 = vmatpush1.msra.mxu0 0.0
    %212 = vmatprep.subr.mxu0 0.0
    %213 = vmatpush1.msra.mxu0 0.0
    %214 = vmatprep.mubr.f32.mxu0 0.0
    %215 = vmatmul.mubr.f32.gmra.mrb[0].mxu0 %v148
    %v216 = vpop.f32.mrb[0].mxu0
    %v217 = vadd.f32 %v144, %v216
    %v218 = vpop.f32.mrb[0].mxu0
    %219 = vdwg.mxu0
    %v220 = vmax.f32 %v217, 0.0
    %v221 = vld [vmem:[%s5] sm:$0x1]
    %v222 = vld [vmem:[#allocation2] sm:$0x1]
    %224 = vset.pattern.permute.xlu0 0
    %225 = vperm.xlu0 %224, %v222
    %v226 = vpop.permute.xlu0 %225
    %v228 = vlaneseq
    %v229 = vshrl.u32 %v228, 7
    %v230 = vsub.s32 0, %v229
    %v231 = vrot.slane %v226, %v230
    %v233 = vsel %vm146, %v221, 0
    %v236 = vsel %vm146, %v220, 0
    %238 = vmatprep.subr.mxu0 0.0
    %239 = vmatpush1.xpose.msra.mxu0 %v236
    %240 = vmatprep.subr.mxu0 0.0
    %241 = vmatpush1.xpose.msra.mxu0 0.0
    %242 = vmatprep.subr.mxu0 0.0
    %243 = vmatpush1.xpose.msra.mxu0 0.0
    %244 = vmatprep.subr.mxu0 0.0
    %245 = vmatpush1.xpose.msra.mxu0 0.0
    %246 = vmatprep.subr.mxu0 0.0
    %247 = vmatpush1.xpose.msra.mxu0 0.0
    %248 = vmatprep.subr.mxu0 0.0
    %249 = vmatpush1.xpose.msra.mxu0 0.0
    %250 = vmatprep.subr.mxu0 0.0
    %251 = vmatpush1.xpose.msra.mxu0 0.0
    %252 = vmatprep.subr.mxu0 0.0
    %253 = vmatpush1.xpose.msra.mxu0 0.0
    %254 = vmatprep.subr.mxu0 0.0
    %255 = vmatpush1.xpose.msra.mxu0 0.0
    %256 = vmatprep.subr.mxu0 0.0
    %257 = vmatpush1.xpose.msra.mxu0 0.0
    %258 = vmatprep.subr.mxu0 0.0
    %259 = vmatpush1.xpose.msra.mxu0 0.0
    %260 = vmatprep.subr.mxu0 0.0
    %261 = vmatpush1.xpose.msra.mxu0 0.0
    %262 = vmatprep.subr.mxu0 0.0
    %263 = vmatpush1.xpose.msra.mxu0 0.0
    %264 = vmatprep.subr.mxu0 0.0
    %265 = vmatpush1.xpose.msra.mxu0 0.0
    %266 = vmatprep.subr.mxu0 0.0
    %267 = vmatpush1.xpose.msra.mxu0 0.0
    %268 = vmatprep.subr.mxu0 0.0
    %269 = vmatpush1.xpose.msra.mxu0 0.0
    %270 = vmatprep.subr.mxu0 0.0
    %271 = vmatpush1.xpose.msra.mxu0 0.0
    %272 = vmatprep.subr.mxu0 0.0
    %273 = vmatpush1.xpose.msra.mxu0 0.0
    %274 = vmatprep.subr.mxu0 0.0
    %275 = vmatpush1.xpose.msra.mxu0 0.0
    %276 = vmatprep.subr.mxu0 0.0
    %277 = vmatpush1.xpose.msra.mxu0 0.0
    %278 = vmatprep.subr.mxu0 0.0
    %279 = vmatpush1.xpose.msra.mxu0 0.0
    %280 = vmatprep.subr.mxu0 0.0
    %281 = vmatpush1.xpose.msra.mxu0 0.0
    %282 = vmatprep.subr.mxu0 0.0
    %283 = vmatpush1.xpose.msra.mxu0 0.0
    %284 = vmatprep.subr.mxu0 0.0
    %285 = vmatpush1.xpose.msra.mxu0 0.0
    %286 = vmatprep.subr.mxu0 0.0
    %287 = vmatpush1.xpose.msra.mxu0 0.0
    %288 = vmatprep.subr.mxu0 0.0
    %289 = vmatpush1.xpose.msra.mxu0 0.0
    %290 = vmatprep.subr.mxu0 0.0
    %291 = vmatpush1.xpose.msra.mxu0 0.0
    %292 = vmatprep.subr.mxu0 0.0
    %293 = vmatpush1.xpose.msra.mxu0 0.0
    %294 = vmatprep.subr.mxu0 0.0
    %295 = vmatpush1.xpose.msra.mxu0 0.0
    %296 = vmatprep.subr.mxu0 0.0
    %297 = vmatpush1.xpose.msra.mxu0 0.0
    %298 = vmatprep.subr.mxu0 0.0
    %299 = vmatpush1.xpose.msra.mxu0 0.0
    %300 = vmatprep.subr.mxu0 0.0
    %301 = vmatpush1.xpose.msra.mxu0 0.0
    %302 = vmatprep.mubr.f32.mxu0 0.0
    %303 = vmatmul.mubr.f32.gmra.mrb[0].mxu0 %v233
    %v304 = vpop.f32.mrb[0].mxu0
    %v305 = vadd.f32 %v231, %v304
    %v306 = vpop.f32.mrb[0].mxu0
    %307 = vdwg.mxu0
    %vm308 = vcmask 57344
    %309 = vst.msk [vmem:[#allocation6] sm:$0x1] %vm308, %v305
    // Predicated region
    $region34: #{tpu_custom_call.1} parent=1 // pred_check
      _
    $region35: #{tpu_custom_call.1} parent=1 // pred_check_branch
      %311 = sbr.rel (0) target = $region37
    $region36: #{tpu_custom_call.1} parent=1 // pred_region
      %s313 = ssub.s32 16, 16
      %314 = vsyncadd [#allocation5], %s313
      %s316 = sshll.u32 [#allocation6], 4
      %s317 = int_to_ptr.vmem [resolvable:$true] %s316
      %319 = dma.vmem_to_hbm [thread:$0]  %s317, 16, %s7, [#allocation5]
    $region37: #{tpu_custom_call.1} parent=1 // pred_fallthru
      _
    // Predicated region
    $region38: #{tpu_custom_call.1} parent=1 // pred_check
      _
    $region39: #{tpu_custom_call.1} parent=1 // pred_check_branch
      %321 = sbr.rel (0) target = $region41
    $region40: #{tpu_custom_call.1} parent=1 // pred_region
      %322 = dma.done [#allocation5], 16
    $region41: #{tpu_custom_call.1} parent=1 // pred_fallthru
      _
    %323 = vsyncpa [#allocation4], 1
    %324 = vsyncpa [#allocation5], 1

</llo_original>
